<compile_context>
chip_gen: v6e
topology: v6e:2x2x1
jax: 0.10.0
libtpu: 0.0.40
codegen_flags: <defaults>
</compile_context>

<pallas_src>
import numpy as np
import jax
import jax.numpy as jnp
from jax.experimental import pallas as pl
from jax.experimental.pallas import tpu as pltpu

N_JOINTS = 24
N_DIMS = 3


def _pad(n, m):
    return ((n + m - 1) // m) * m


def _bone_align_kernel(pts_ref, mat_ref, jt_ref, t_ref):
    """One ray-tile per grid step.

    pts_ref : (TR, S, 3)    sample points of TR rays
    mat_ref : (TRs, 8, C)   packed per-ray transform rows, C = NJ*3 (lane axis):
                            rows 0..2 world->local rotation rows (by input coord),
                            row 3 its translation, rows 4..6 folded (bone-align @
                            world->local) rotation rows, row 7 its translation.
                            TRs == TR (per-ray skts) or 1 (shared skts).
    jt_ref  : (TR, S, C)    pts_jt output (flat joints)
    t_ref   : (TR, S, C)    pts_t  output (flat joints)
    """
    pts = pts_ref[...].astype(jnp.float32)        # (TR, S, 3)
    x = pts[:, :, 0:1]                            # (TR, S, 1) -> lane-broadcast over C
    y = pts[:, :, 1:2]
    z = pts[:, :, 2:3]

    m = mat_ref[...].astype(jnp.float32)          # (TRs, 8, C)

    # pts_jt[r, s, j*3+a] = sum_b skts[r, j, a, b] * pts[r, s, b] + skts[r, j, a, 3]
    pts_jt = (x * m[:, 0:1, :] + y * m[:, 1:2, :] + z * m[:, 2:3, :] + m[:, 3:4, :])
    # pts_t via folded transform: an independent 3-FMA pass (better ILP, no (C,C) operand).
    pts_t = (x * m[:, 4:5, :] + y * m[:, 5:6, :] + z * m[:, 6:7, :] + m[:, 7:8, :])

    jt_ref[...] = pts_jt.astype(jt_ref.dtype)
    t_ref[...] = pts_t.astype(t_ref.dtype)


def _choose_ray_tile(n_rays, per_ray_db_bytes, fixed_db_bytes, budget_bytes):
    """Pick a ray tile from the (8,128)-padded, double-buffered VMEM footprint."""
    avail = max(per_ray_db_bytes, budget_bytes - fixed_db_bytes)
    tr = max(1, int(avail // per_ray_db_bytes))
    tr = min(tr, n_rays)
    if tr >= 8:
        tr -= tr % 8                              # sublane-aligned; still within budget
    if n_rays >= 16:
        steps = -(-n_rays // tr)
        if steps == 1:
            # Enough VMEM for everything: still split so both v7x TensorCores get work.
            tr = -(-n_rays // 2)
            if tr >= 8:
                tr = _pad(tr, 8)                  # <= n_rays <= previous fit, so safe
        elif steps % 2 == 1:
            # Prefer an even step count so the "parallel" axis splits evenly across TCs.
            alt = -(-n_rays // (steps + 1))
            if alt >= 8:
                alt = _pad(alt, 8)
            if 0 < alt <= tr and (-(-n_rays // alt)) % 2 == 0:
                tr = alt
    return int(tr)


def bone_align_forward(pts, skts, transforms, *, out_dtype=None, ray_tile=None,
                       vmem_budget_bytes=36 * 1024 * 1024):
    """Pallas implementation of BoneAlignEmbedder.forward (rigid_idxs=None)."""
    N_rays, N_samples, _ = pts.shape
    NJ = skts.shape[-3]
    C = NJ * N_DIMS
    out_dtype = pts.dtype if out_dtype is None else jnp.dtype(out_dtype)

    RB = skts.shape[0]
    if RB not in (1, N_rays):
        # torch `expand` only applies from size-1; other mismatches fall back to broadcast.
        skts = jnp.broadcast_to(skts, (N_rays,) + skts.shape[1:])
        RB = N_rays

    skts = skts.astype(jnp.float32)
    transforms = transforms.astype(jnp.float32)

    # --- glue: build the packed (RB, 8, C) transform matrix, lane-dense in C ---
    rot = skts[:, :, :3, :3]                                   # (RB, NJ, 3, 3) [r,j,a,b]
    trn = skts[:, :, :3, 3]                                    # (RB, NJ, 3)    [r,j,a]
    A = transforms[:, :3, :3]                                  # (NJ, 3, 3)     [j,a,k]
    bias = transforms[:, :3, 3]                                # (NJ, 3)        [j,a]
    # Fold the (block-diagonal) bone-align transform into the skeleton transform.
    rot_t = jnp.einsum('jak,rjkb->rjab', A, rot)               # (RB, NJ, 3, 3)
    trn_t = jnp.einsum('jak,rjk->rja', A, trn) + bias          # (RB, NJ, 3)

    def pack(r, t):
        rr = r.transpose(0, 3, 1, 2).reshape(RB, 3, C)         # [r, b, j*3+a]
        return jnp.concatenate([rr, t.reshape(RB, 1, C)], axis=1)

    mat = jnp.concatenate([pack(rot, trn), pack(rot_t, trn_t)], axis=1)   # (RB, 8, C) f32

    # --- size the ray tile from the PADDED, double-buffered VMEM footprint ---
    in_isz = jnp.dtype(pts.dtype).itemsize
    out_isz = jnp.dtype(out_dtype).itemsize
    S_pad = _pad(N_samples, 8)
    lane_C = _pad(C, 128)                                       # 72 -> 128 lanes
    per_ray = S_pad * 128 * in_isz + 2 * S_pad * lane_C * out_isz
    skel_bytes = 8 * lane_C * 4
    fixed = 0
    if RB == 1:
        fixed = 2 * skel_bytes                                  # shared block, double-buffered
    else:
        per_ray += skel_bytes

    if ray_tile is not None:
        TR = int(min(int(ray_tile), N_rays))
    else:
        TR = _choose_ray_tile(N_rays, 2 * per_ray, fixed, vmem_budget_bytes)
    grid = (pl.cdiv(N_rays, TR),)

    if RB == 1:
        # Shared skeleton transforms: never materialized per ray; block 0 every step.
        mat_spec = pl.BlockSpec((1, 8, C), lambda r: (0, 0, 0))
    else:
        mat_spec = pl.BlockSpec((TR, 8, C), lambda r: (r, 0, 0))

    out_shape = (
        jax.ShapeDtypeStruct((N_rays, N_samples, C), out_dtype),   # pts_jt (flat joints)
        jax.ShapeDtypeStruct((N_rays, N_samples, C), out_dtype),   # pts_t  (flat joints)
    )

    cost = pl.CostEstimate(
        flops=12 * N_rays * N_samples * C,
        transcendentals=0,
        bytes_accessed=int(N_rays * N_samples * 3 * in_isz + RB * 8 * C * 4
                           + 2 * N_rays * N_samples * C * out_isz),
    )

    vmem_limit = int(min(112 << 20, max(vmem_budget_bytes + (8 << 20), 32 << 20)))

    jt_flat, t_flat = pl.pallas_call(
        _bone_align_kernel,
        out_shape=out_shape,
        grid=grid,
        in_specs=[
            pl.BlockSpec((TR, N_samples, 3), lambda r: (r, 0, 0)),
            mat_spec,
        ],
        out_specs=(
            pl.BlockSpec((TR, N_samples, C), lambda r: (r, 0, 0)),
            pl.BlockSpec((TR, N_samples, C), lambda r: (r, 0, 0)),
        ),
        compiler_params=pltpu.CompilerParams(
            dimension_semantics=("parallel",),
            vmem_limit_bytes=vmem_limit),
        cost_estimate=cost,
    )(pts, mat)

    pts_jt = jt_flat.reshape(N_rays, N_samples, NJ, N_DIMS)
    pts_t = t_flat.reshape(N_rays, N_samples, NJ, N_DIMS)
    return {'pts_t': pts_t, 'pts_jt': pts_jt}


def reference_forward(pts, skts, transforms):
    """Pure-JAX reference mirroring the PyTorch code (two-step, unfolded)."""
    N_rays = pts.shape[0]
    if skts.shape[0] < N_rays:
        skts = jnp.broadcast_to(skts, (N_rays,) + skts.shape[1:])
    hom = jnp.concatenate(
        [pts, jnp.ones(pts.shape[:-1] + (1,), pts.dtype)], axis=-1)       # (R,S,4)
    mm = jnp.einsum('rjab,rsb->rsja', skts, hom)                          # (R,S,NJ,4)
    pts_jt = mm[..., :3]
    pts_t = (jnp.einsum('jab,rsjb->rsja', transforms[:, :3, :3], pts_jt)
             + transforms[:, :3, 3])
    return {'pts_t': pts_t, 'pts_jt': pts_jt}


def _to_affine(m):
    """Force the last row of (..., 4, 4) matrices to [0, 0, 0, 1]."""
    last = jnp.broadcast_to(jnp.array([0., 0., 0., 1.], jnp.float32),
                            m.shape[:-2] + (1, 4))
    return jnp.concatenate([m[..., :3, :], last], axis=-2)


if __name__ == "__main__":
    key = jax.random.PRNGKey(0)
    k_pts, k_skt, k_tr, k_pts2, k_skt2 = jax.random.split(key, 5)

    # TODO(synk): get_bone_align_transforms is not provided; synthesize a deterministic
    # (N_joints, 4, 4) transform buffer instead of deriving it from a rest pose.
    transforms = _to_affine(
        jax.random.normal(k_tr, (N_JOINTS, 4, 4), jnp.float32) * 0.5)

    # --- test 1: per-ray skeleton transforms, f32 outputs ---
    N_rays, N_samples = 2, 8
    pts = jax.random.normal(k_pts, (N_rays, N_samples, N_DIMS), jnp.float32)
    skts = _to_affine(jax.random.normal(k_skt, (N_rays, N_JOINTS, 4, 4), jnp.float32))

    out = bone_align_forward(pts, skts, transforms)
    jax.block_until_ready(out)
    ref = reference_forward(pts, skts, transforms)
    np.testing.assert_allclose(np.asarray(out['pts_jt']), np.asarray(ref['pts_jt']),
                               rtol=1e-4, atol=1e-4)
    np.testing.assert_allclose(np.asarray(out['pts_t']), np.asarray(ref['pts_t']),
                               rtol=1e-4, atol=1e-4)

    # --- test 2: shared skeleton (leading dim 1) + ragged last ray tile ---
    N_rays2, N_samples2 = 10, 16
    pts2 = jax.random.normal(k_pts2, (N_rays2, N_samples2, N_DIMS), jnp.float32)
    skts2 = _to_affine(jax.random.normal(k_skt2, (1, N_JOINTS, 4, 4), jnp.float32))

    out2 = bone_align_forward(pts2, skts2, transforms, ray_tile=8)  # forces a partial block
    jax.block_until_ready(out2)
    ref2 = reference_forward(pts2, skts2, transforms)
    np.testing.assert_allclose(np.asarray(out2['pts_jt']), np.asarray(ref2['pts_jt']),
                               rtol=1e-4, atol=1e-4)
    np.testing.assert_allclose(np.asarray(out2['pts_t']), np.asarray(ref2['pts_t']),
                               rtol=1e-4, atol=1e-4)

    # --- test 3: optional bf16 outputs (halved write traffic); f32 accumulation ---
    out3 = bone_align_forward(pts, skts, transforms, out_dtype=jnp.bfloat16)
    jax.block_until_ready(out3)
    np.testing.assert_allclose(np.asarray(out3['pts_jt'], dtype=np.float32),
                               np.asarray(ref['pts_jt']), rtol=2e-2, atol=1e-1)
    np.testing.assert_allclose(np.asarray(out3['pts_t'], dtype=np.float32),
                               np.asarray(ref['pts_t']), rtol=2e-2, atol=1e-1)

    print("KERNEL_OK")
</pallas_src>

<mosaic_0001>
module attributes {stable_mosaic.version = 11 : i64} {
  func.func @_bone_align_kernel(%arg0: i32, %arg1: memref<2x8x3xf32, #tpu.memory_space<vmem>>, %arg2: memref<2x8x72xf32, #tpu.memory_space<vmem>>, %arg3: memref<2x8x72xf32, #tpu.memory_space<vmem>>, %arg4: memref<2x8x72xf32, #tpu.memory_space<vmem>>) attributes {dimension_semantics = [#tpu.dimension_semantics<parallel>], iteration_bounds = array<i64: 1>, scalar_prefetch = 0 : i64, scratch_operands = 0 : i64, tpu.core_type = #tpu.core_type<tc>, window_params = [{transform_indices = @transform_0, window_bounds = array<i64: 2, 8, 3>}, {transform_indices = @transform_1, window_bounds = array<i64: 2, 8, 72>}, {transform_indices = @transform_2, window_bounds = array<i64: 2, 8, 72>}, {transform_indices = @transform_3, window_bounds = array<i64: 2, 8, 72>}]} {
    %c0 = arith.constant 0 : index
    %c0_0 = arith.constant 0 : index
    %c0_1 = arith.constant 0 : index
    %0 = vector.load %arg1[%c0, %c0_0, %c0_1] : memref<2x8x3xf32, #tpu.memory_space<vmem>>, vector<2x8x3xf32>
    %1 = vector.extract_strided_slice %0 {offsets = [0, 0, 0], sizes = [2, 8, 1], strides = [1, 1, 1]} : vector<2x8x3xf32> to vector<2x8x1xf32>
    %2 = vector.extract_strided_slice %0 {offsets = [0, 0, 1], sizes = [2, 8, 1], strides = [1, 1, 1]} : vector<2x8x3xf32> to vector<2x8x1xf32>
    %3 = vector.extract_strided_slice %0 {offsets = [0, 0, 2], sizes = [2, 8, 1], strides = [1, 1, 1]} : vector<2x8x3xf32> to vector<2x8x1xf32>
    %c0_2 = arith.constant 0 : index
    %c0_3 = arith.constant 0 : index
    %c0_4 = arith.constant 0 : index
    %4 = vector.load %arg2[%c0_2, %c0_3, %c0_4] : memref<2x8x72xf32, #tpu.memory_space<vmem>>, vector<2x8x72xf32>
    %5 = vector.extract_strided_slice %4 {offsets = [0, 0, 0], sizes = [2, 1, 72], strides = [1, 1, 1]} : vector<2x8x72xf32> to vector<2x1x72xf32>
    %6 = vector.broadcast %1 : vector<2x8x1xf32> to vector<2x8x72xf32>
    %7 = vector.broadcast %5 : vector<2x1x72xf32> to vector<2x8x72xf32>
    %8 = arith.mulf %6, %7 : vector<2x8x72xf32>
    %9 = vector.extract_strided_slice %4 {offsets = [0, 1, 0], sizes = [2, 1, 72], strides = [1, 1, 1]} : vector<2x8x72xf32> to vector<2x1x72xf32>
    %10 = vector.broadcast %2 : vector<2x8x1xf32> to vector<2x8x72xf32>
    %11 = vector.broadcast %9 : vector<2x1x72xf32> to vector<2x8x72xf32>
    %12 = arith.mulf %10, %11 : vector<2x8x72xf32>
    %13 = arith.addf %8, %12 : vector<2x8x72xf32>
    %14 = vector.extract_strided_slice %4 {offsets = [0, 2, 0], sizes = [2, 1, 72], strides = [1, 1, 1]} : vector<2x8x72xf32> to vector<2x1x72xf32>
    %15 = vector.broadcast %3 : vector<2x8x1xf32> to vector<2x8x72xf32>
    %16 = vector.broadcast %14 : vector<2x1x72xf32> to vector<2x8x72xf32>
    %17 = arith.mulf %15, %16 : vector<2x8x72xf32>
    %18 = arith.addf %13, %17 : vector<2x8x72xf32>
    %19 = vector.extract_strided_slice %4 {offsets = [0, 3, 0], sizes = [2, 1, 72], strides = [1, 1, 1]} : vector<2x8x72xf32> to vector<2x1x72xf32>
    %20 = vector.broadcast %19 : vector<2x1x72xf32> to vector<2x8x72xf32>
    %21 = arith.addf %18, %20 : vector<2x8x72xf32>
    %22 = vector.extract_strided_slice %4 {offsets = [0, 4, 0], sizes = [2, 1, 72], strides = [1, 1, 1]} : vector<2x8x72xf32> to vector<2x1x72xf32>
    %23 = vector.broadcast %1 : vector<2x8x1xf32> to vector<2x8x72xf32>
    %24 = vector.broadcast %22 : vector<2x1x72xf32> to vector<2x8x72xf32>
    %25 = arith.mulf %23, %24 : vector<2x8x72xf32>
    %26 = vector.extract_strided_slice %4 {offsets = [0, 5, 0], sizes = [2, 1, 72], strides = [1, 1, 1]} : vector<2x8x72xf32> to vector<2x1x72xf32>
    %27 = vector.broadcast %2 : vector<2x8x1xf32> to vector<2x8x72xf32>
    %28 = vector.broadcast %26 : vector<2x1x72xf32> to vector<2x8x72xf32>
    %29 = arith.mulf %27, %28 : vector<2x8x72xf32>
    %30 = arith.addf %25, %29 : vector<2x8x72xf32>
    %31 = vector.extract_strided_slice %4 {offsets = [0, 6, 0], sizes = [2, 1, 72], strides = [1, 1, 1]} : vector<2x8x72xf32> to vector<2x1x72xf32>
    %32 = vector.broadcast %3 : vector<2x8x1xf32> to vector<2x8x72xf32>
    %33 = vector.broadcast %31 : vector<2x1x72xf32> to vector<2x8x72xf32>
    %34 = arith.mulf %32, %33 : vector<2x8x72xf32>
    %35 = arith.addf %30, %34 : vector<2x8x72xf32>
    %36 = vector.extract_strided_slice %4 {offsets = [0, 7, 0], sizes = [2, 1, 72], strides = [1, 1, 1]} : vector<2x8x72xf32> to vector<2x1x72xf32>
    %37 = vector.broadcast %36 : vector<2x1x72xf32> to vector<2x8x72xf32>
    %38 = arith.addf %35, %37 : vector<2x8x72xf32>
    %c0_5 = arith.constant 0 : index
    %c0_6 = arith.constant 0 : index
    %c0_7 = arith.constant 0 : index
    %39 = vector.load %arg3[%c0_5, %c0_6, %c0_7] : memref<2x8x72xf32, #tpu.memory_space<vmem>>, vector<2x8x72xf32>
    tpu.vector_store %arg3[%c0_5, %c0_6, %c0_7], %21 {strides = array<i32>} : memref<2x8x72xf32, #tpu.memory_space<vmem>>, vector<2x8x72xf32>,
    %c0_8 = arith.constant 0 : index
    %c0_9 = arith.constant 0 : index
    %c0_10 = arith.constant 0 : index
    %40 = vector.load %arg4[%c0_8, %c0_9, %c0_10] : memref<2x8x72xf32, #tpu.memory_space<vmem>>, vector<2x8x72xf32>
    tpu.vector_store %arg4[%c0_8, %c0_9, %c0_10], %38 {strides = array<i32>} : memref<2x8x72xf32, #tpu.memory_space<vmem>>, vector<2x8x72xf32>,
    return
  }
  func.func @transform_0(%arg0: i32) -> (i32, i32, i32) {
    %c0_i32 = arith.constant 0 : i32
    %c0_i32_0 = arith.constant 0 : i32
    %c0_i32_1 = arith.constant 0 : i32
    return %arg0, %c0_i32, %c0_i32_0 : i32, i32, i32
  }
  func.func @transform_1(%arg0: i32) -> (i32, i32, i32) {
    %c0_i32 = arith.constant 0 : i32
    %c0_i32_0 = arith.constant 0 : i32
    %c0_i32_1 = arith.constant 0 : i32
    return %arg0, %c0_i32, %c0_i32_0 : i32, i32, i32
  }
  func.func @transform_2(%arg0: i32) -> (i32, i32, i32) {
    %c0_i32 = arith.constant 0 : i32
    %c0_i32_0 = arith.constant 0 : i32
    %c0_i32_1 = arith.constant 0 : i32
    return %arg0, %c0_i32, %c0_i32_0 : i32, i32, i32
  }
  func.func @transform_3(%arg0: i32) -> (i32, i32, i32) {
    %c0_i32 = arith.constant 0 : i32
    %c0_i32_0 = arith.constant 0 : i32
    %c0_i32_1 = arith.constant 0 : i32
    return %arg0, %c0_i32, %c0_i32_0 : i32, i32, i32
  }
}

</mosaic_0001>

<llo_original>
// kernel: tpu_custom_call.1
$region0: #{tpu_custom_call.1}
  #allocation0 [shape = 'u32[]', space=smem, size = 0x4, offset = 0x4, fixed_abs, tag = 'smem constant byte address 0x4 - core index']
  #allocation1 [shape = 'u32[144,128]{1,0:T(1,128)}', space=vmem, size = 0x12000, scoped, tag = 'internal scratch']
  %s0 = inlined_call_operand.vmem [shape: f32[2,8,3], index: 0, kind: input, shape index: {}]
  %s1 = inlined_call_operand.vmem [shape: f32[2,8,72], index: 1, kind: input, shape index: {}]
  %s2 = inlined_call_operand.hbm [shape: f32[2,8,72], index: 2, kind: output, shape index: {0}]
  %s3 = inlined_call_operand.hbm [shape: f32[2,8,72], index: 3, kind: output, shape index: {1}]
  %4 = xla_tuple %s2, %s3
  %s5 = sld [smem:[#allocation0]]
  $region26: #{tpu_custom_call.1} parent=0
    _
  %s7 = ssub.s32 1, %s5
  %s8 = scalar_select 0, %s7, %s5
  $region1: #{tpu_custom_call.1} parent=0
    #allocation2 [shape = 'u8[8192]{0}', space=vmem, size = 0x2000, scoped, tag = 'output window, operand 0, single buffered']
    #allocation3 [shape = 's32[1]{0}', space=sflag, size = 0x4, scoped, tag = 'scoped memory for tpu_custom_call.1']
    #allocation4 [shape = 'u8[8192]{0}', space=vmem, size = 0x2000, scoped, tag = 'output window, operand 1, single buffered']
    #allocation5 [shape = 's32[1]{0}', space=sflag, size = 0x4, scoped, tag = 'scoped memory for tpu_custom_call.1']
    %9 = vsyncpa [#allocation3], 0
    %10 = vsyncpa [#allocation5], 0
    // Predicated region
    $region2: #{tpu_custom_call.1} parent=1 // pred_check
      _
    $region3: #{tpu_custom_call.1} parent=1 // pred_check_branch
      %12 = sbr.rel (0) target = $region5
    $region4: #{tpu_custom_call.1} parent=1 // pred_region
      _
    $region5: #{tpu_custom_call.1} parent=1 // pred_fallthru
      _
    // Predicated region
    $region6: #{tpu_custom_call.1} parent=1 // pred_check
      _
    $region7: #{tpu_custom_call.1} parent=1 // pred_check_branch
      %14 = sbr.rel (0) target = $region9
    $region8: #{tpu_custom_call.1} parent=1 // pred_region
      _
    $region9: #{tpu_custom_call.1} parent=1 // pred_fallthru
      _
    %v15 = vld [vmem:[%s0] sm:$0xff]
    %v16 = vld [vmem:[%s0 + $0x8] sm:$0xff]
    %v17 = vld [vmem:[%s1] sm:$0xff]
    %v18 = vld [vmem:[%s1 + $0x8] sm:$0xff]
    %20 = vset.pattern.permute.xlu0 0
    %21 = vperm.xlu0 %20, %v15
    %v22 = vpop.permute.xlu0 %21
    %25 = vset.pattern.permute.xlu0 0
    %26 = vperm.xlu0 %25, %v16
    %v27 = vpop.permute.xlu0 %26
    %v29 = vlaneseq
    %v30 = vshrl.u32 %v29, 7
    %v31 = vsub.s32 0, %v30
    %v32 = vrot.slane %v17, %v31
    %v33 = vlaneseq
    %v34 = vshrl.u32 %v33, 7
    %v35 = vsub.s32 0, %v34
    %v36 = vrot.slane %v18, %v35
    %v37 = vmul.f32 %v22, %v32
    %v38 = vmul.f32 %v27, %v36
    %39 = vset.pattern.permute.xlu0 1
    %40 = vperm.xlu0 %39, %v15
    %v41 = vpop.permute.xlu0 %40
    %43 = vset.pattern.permute.xlu0 1
    %44 = vperm.xlu0 %43, %v16
    %v45 = vpop.permute.xlu0 %44
    %v47 = vlaneseq
    %v48 = vshrl.u32 %v47, 7
    %v49 = vsub.s32 1, %v48
    %v50 = vrot.slane %v17, %v49
    %v51 = vlaneseq
    %v52 = vshrl.u32 %v51, 7
    %v53 = vsub.s32 1, %v52
    %v54 = vrot.slane %v18, %v53
    %v55 = vmul.f32 %v41, %v50
    %v56 = vmul.f32 %v45, %v54
    %v57 = vadd.f32 %v37, %v55
    %v58 = vadd.f32 %v38, %v56
    %59 = vset.pattern.permute.xlu0 2
    %60 = vperm.xlu0 %59, %v15
    %v61 = vpop.permute.xlu0 %60
    %63 = vset.pattern.permute.xlu0 2
    %64 = vperm.xlu0 %63, %v16
    %v65 = vpop.permute.xlu0 %64
    %v67 = vlaneseq
    %v68 = vshrl.u32 %v67, 7
    %v69 = vsub.s32 2, %v68
    %v70 = vrot.slane %v17, %v69
    %v71 = vlaneseq
    %v72 = vshrl.u32 %v71, 7
    %v73 = vsub.s32 2, %v72
    %v74 = vrot.slane %v18, %v73
    %v75 = vmul.f32 %v61, %v70
    %v76 = vmul.f32 %v65, %v74
    %v77 = vadd.f32 %v57, %v75
    %v78 = vadd.f32 %v58, %v76
    %v79 = vlaneseq
    %v80 = vshrl.u32 %v79, 7
    %v81 = vsub.s32 3, %v80
    %v82 = vrot.slane %v17, %v81
    %v83 = vlaneseq
    %v84 = vshrl.u32 %v83, 7
    %v85 = vsub.s32 3, %v84
    %v86 = vrot.slane %v18, %v85
    %v87 = vadd.f32 %v77, %v82
    %v88 = vadd.f32 %v78, %v86
    %v89 = vlaneseq
    %v90 = vshrl.u32 %v89, 7
    %v91 = vsub.s32 4, %v90
    %v92 = vrot.slane %v17, %v91
    %v93 = vlaneseq
    %v94 = vshrl.u32 %v93, 7
    %v95 = vsub.s32 4, %v94
    %v96 = vrot.slane %v18, %v95
    %v97 = vmul.f32 %v22, %v92
    %v98 = vmul.f32 %v27, %v96
    %v99 = vlaneseq
    %v100 = vshrl.u32 %v99, 7
    %v101 = vsub.s32 5, %v100
    %v102 = vrot.slane %v17, %v101
    %v103 = vlaneseq
    %v104 = vshrl.u32 %v103, 7
    %v105 = vsub.s32 5, %v104
    %v106 = vrot.slane %v18, %v105
    %v107 = vmul.f32 %v41, %v102
    %v108 = vmul.f32 %v45, %v106
    %v109 = vadd.f32 %v97, %v107
    %v110 = vadd.f32 %v98, %v108
    %v111 = vlaneseq
    %v112 = vshrl.u32 %v111, 7
    %v113 = vsub.s32 6, %v112
    %v114 = vrot.slane %v17, %v113
    %v115 = vlaneseq
    %v116 = vshrl.u32 %v115, 7
    %v117 = vsub.s32 6, %v116
    %v118 = vrot.slane %v18, %v117
    %v119 = vmul.f32 %v61, %v114
    %v120 = vmul.f32 %v65, %v118
    %v121 = vadd.f32 %v109, %v119
    %v122 = vadd.f32 %v110, %v120
    %v123 = vlaneseq
    %v124 = vshrl.u32 %v123, 7
    %v125 = vsub.s32 7, %v124
    %v126 = vrot.slane %v17, %v125
    %v127 = vlaneseq
    %v128 = vshrl.u32 %v127, 7
    %v129 = vsub.s32 7, %v128
    %v130 = vrot.slane %v18, %v129
    %v131 = vadd.f32 %v121, %v126
    %v132 = vadd.f32 %v122, %v130
    %vm133 = vcmask 588800
    %134 = vst.msk [vmem:[#allocation2] sm:$0xff] %vm133, %v87
    %135 = vst.msk [vmem:[#allocation2 + $0x8] sm:$0xff] %vm133, %v88
    %136 = vst.msk [vmem:[#allocation4] sm:$0xff] %vm133, %v131
    %137 = vst.msk [vmem:[#allocation4 + $0x8] sm:$0xff] %vm133, %v132
    // Predicated region
    $region10: #{tpu_custom_call.1} parent=1 // pred_check
      _
    $region11: #{tpu_custom_call.1} parent=1 // pred_check_branch
      %139 = sbr.rel (0) target = $region13
    $region12: #{tpu_custom_call.1} parent=1 // pred_region
      %s141 = ssub.s32 256, 256
      %142 = vsyncadd [#allocation3], %s141
      %s143 = sshll.u32 [#allocation2], 4
      %s144 = int_to_ptr.vmem [resolvable:$true] %s143
      %149 = dma.vmem_to_hbm [thread:$0]  %s144, 256, %s2, [#allocation3], 128, 128, 8
    $region13: #{tpu_custom_call.1} parent=1 // pred_fallthru
      _
    // Predicated region
    $region14: #{tpu_custom_call.1} parent=1 // pred_check
      _
    $region15: #{tpu_custom_call.1} parent=1 // pred_check_branch
      %151 = sbr.rel (0) target = $region17
    $region16: #{tpu_custom_call.1} parent=1 // pred_region
      %s153 = ssub.s32 256, 256
      %154 = vsyncadd [#allocation5], %s153
      %s155 = sshll.u32 [#allocation4], 4
      %s156 = int_to_ptr.vmem [resolvable:$true] %s155
      %161 = dma.vmem_to_hbm [thread:$0]  %s156, 256, %s3, [#allocation5], 128, 128, 8
    $region17: #{tpu_custom_call.1} parent=1 // pred_fallthru
      _
    // Predicated region
    $region18: #{tpu_custom_call.1} parent=1 // pred_check
      _
    $region19: #{tpu_custom_call.1} parent=1 // pred_check_branch
      %163 = sbr.rel (0) target = $region21
    $region20: #{tpu_custom_call.1} parent=1 // pred_region
      %164 = dma.done [#allocation3], 256
    $region21: #{tpu_custom_call.1} parent=1 // pred_fallthru
      _
    // Predicated region
    $region22: #{tpu_custom_call.1} parent=1 // pred_check
      _
    $region23: #{tpu_custom_call.1} parent=1 // pred_check_branch
      %166 = sbr.rel (0) target = $region25
    $region24: #{tpu_custom_call.1} parent=1 // pred_region
      %167 = dma.done [#allocation5], 256
    $region25: #{tpu_custom_call.1} parent=1 // pred_fallthru
      _
    %168 = vsyncpa [#allocation3], 1
    %169 = vsyncpa [#allocation5], 1

</llo_original>
